<compile_context>
chip_gen: v5e
topology: v5e:2x2
jax: 0.10.0
libtpu: 0.0.40
codegen_flags: <defaults>
</compile_context>

<pallas_src>
import functools

import jax
import jax.numpy as jnp
from jax import lax
from jax.experimental import pallas as pl
from jax.experimental.pallas import tpu as pltpu

_NEG_INF = -1e30  # "minus infinity" for padded class columns (finite: no NaN from inf-inf)


def _round_up(x, m):
    return (x + m - 1) // m * m


def _pick_tk(din, block_k):
    """Pick a lane-aligned K tile. Prefer a 128-multiple divisor of the
    128-aligned Din so x needs no (or only 128-alignment) padding; fall back to
    padding Din up to a multiple of the desired tile for awkward sizes."""
    d128 = _round_up(din, 128)
    units = d128 // 128
    want = max(1, block_k // 128)
    best = 1
    for u in range(min(units, want), 0, -1):
        if units % u == 0:
            best = u
            break
    if best == units or best * 2 >= want:
        return best * 128, d128          # no extra padding beyond 128-alignment
    tk = want * 128                      # divisor too small (e.g. prime Din/128)
    return tk, _round_up(d128, tk)


def _source_only_fwd_kernel(x_ref, wb_ref, wc_ref, fbias_ref, lab_ref,
                            out_ref, feat_acc,
                            *, block_b, c_pad, true_batch, acc_cast_dtype):
    """K-tiled backbone matmul -> classifier matmul -> masked mean cross-entropy."""
    # NOTE: program_id / num_programs must be read OUTSIDE pl.when bodies so the
    # primitive does not end up inside a cond-branch jaxpr (interpret-mode safe).
    i = pl.program_id(0)
    k = pl.program_id(1)
    nk = pl.num_programs(1)

    @pl.when(k == 0)
    def _():
        feat_acc[...] = jnp.zeros_like(feat_acc)

    # backbone (linear feature extractor): bf16 operands, f32 MXU accumulation
    feat_acc[...] += jnp.dot(x_ref[...], wb_ref[...],
                             preferred_element_type=jnp.float32)

    @pl.when(k == nk - 1)
    def _():
        # classifier head; fused bias = bb @ wc + bc, padded class cols = -1e30.
        # bf16 x bf16 on the MXU with f32 accumulation (wc is stored bf16).
        logits = jnp.dot(feat_acc[...].astype(acc_cast_dtype), wc_ref[...],
                         preferred_element_type=jnp.float32) + fbias_ref[...]

        # numerically stable log-sum-exp over the (padded, masked) class axis
        m = jnp.max(logits, axis=-1, keepdims=True)                 # (tb, 1)
        lse = m + jnp.log(jnp.sum(jnp.exp(logits - m), axis=-1, keepdims=True))

        # true-class logit via iota == label (no one-hot input)
        cls_iota = lax.broadcasted_iota(jnp.int32, (block_b, c_pad), 1)
        sel = cls_iota == lab_ref[...]                              # (tb, c_pad)
        true_logit = jnp.sum(jnp.where(sel, logits, 0.0), axis=-1, keepdims=True)
        per_example = lse - true_logit                              # (tb, 1)

        # zero out rows that are batch padding
        row = i * block_b + lax.broadcasted_iota(jnp.int32, (block_b, 1), 0)
        per_example = jnp.where(row < true_batch, per_example, 0.0)
        partial = jnp.sum(per_example)

        # lane-dense (8,128) output block: partial at [0,0], zeros elsewhere
        r = lax.broadcasted_iota(jnp.int32, (8, 128), 0)
        c = lax.broadcasted_iota(jnp.int32, (8, 128), 1)
        out_ref[...] = jnp.where((r == 0) & (c == 0), partial, 0.0)


def source_only_forward(images_nchw, labels, params, *,
                        block_b=256, block_k=4096,
                        compute_dtype=jnp.bfloat16):
    """JAX wrapper matching SourceOnly.forward semantics (returns scalar loss)."""
    wb, bb, wc, bc = params
    B = images_nchw.shape[0]
    feature_dim, num_classes = wc.shape

    # glue: NCHW -> (B, Din), bf16 for the HBM-heavy operands
    x2d = images_nchw.reshape(B, -1).astype(compute_dtype)
    din = x2d.shape[1]
    itemsize = jnp.dtype(compute_dtype).itemsize

    # lane-dense / tile-aligned padded sizes
    f_pad = _round_up(feature_dim, 128)
    c_pad = _round_up(num_classes, 128)
    # NOTE: large tb minimizes wb re-streaming (wb is re-read once per batch
    # block); if B is huge and you care about v7x megacore split, cap tb so
    # nb >= 2 instead.
    tb = min(_round_up(block_b, 16), _round_up(B, 16))
    b_pad = _round_up(B, tb)
    tk, din_pad = _pick_tk(din, block_k)

    # only materialize a padded activation copy when strictly necessary
    if (b_pad, din_pad) != (B, din):
        x2d = jnp.pad(x2d, ((0, b_pad - B), (0, din_pad - din)))
    wb_p = jnp.pad(wb.astype(compute_dtype),
                   ((0, din_pad - din), (0, f_pad - feature_dim)))
    wc_p = jnp.pad(wc.astype(compute_dtype),
                   ((0, f_pad - feature_dim), (0, c_pad - num_classes)))

    # fold backbone bias through the classifier; padded classes get a -inf-like bias
    fused_bias = (bb.astype(jnp.float32) @ wc.astype(jnp.float32)
                  + bc.astype(jnp.float32))                          # (1, C)
    fused_bias = jnp.pad(fused_bias, ((0, 0), (0, c_pad - num_classes)),
                         constant_values=_NEG_INF)

    labels_p = jnp.pad(labels.astype(jnp.int32), (0, b_pad - B)).reshape(b_pad, 1)

    nb = b_pad // tb
    nk = din_pad // tk

    kernel = functools.partial(_source_only_fwd_kernel,
                               block_b=tb, c_pad=c_pad, true_batch=B,
                               acc_cast_dtype=compute_dtype)

    # advisory cost for XLA scheduling around the kernel
    cost = pl.CostEstimate(
        flops=2 * b_pad * din_pad * f_pad + 2 * b_pad * f_pad * c_pad,
        transcendentals=b_pad * c_pad + b_pad,
        bytes_accessed=(b_pad * din_pad * itemsize            # x (once)
                        + nb * din_pad * f_pad * itemsize     # wb re-streamed per batch block
                        + f_pad * c_pad * itemsize            # wc
                        + c_pad * 4 + b_pad * 4
                        + nb * 8 * 128 * 4),
    )

    # working-set based VMEM budget (double-buffered inputs + resident scratch),
    # capped at 64 MiB so it remains legal on v7x (64 MiB physical VMEM).
    vmem_bytes = (2 * tb * tk * itemsize            # x blocks
                  + 2 * tk * f_pad * itemsize       # wb blocks
                  + 2 * f_pad * c_pad * itemsize    # wc (resident)
                  + 2 * 1 * c_pad * 4               # fused bias
                  + 2 * tb * 128 * 4                # labels (lane-padded)
                  + tb * f_pad * 4                  # f32 feature accumulator
                  + 2 * 8 * 128 * 4)                # output block
    vmem_limit = int(min(64 * 1024 * 1024,
                         max(32 * 1024 * 1024, vmem_bytes + (8 << 20))))

    partials = pl.pallas_call(
        kernel,
        out_shape=jax.ShapeDtypeStruct((nb * 8, 128), jnp.float32),
        grid_spec=pltpu.PrefetchScalarGridSpec(
            num_scalar_prefetch=0,
            grid=(nb, nk),
            in_specs=[
                pl.BlockSpec((tb, tk), lambda i, k: (i, k)),         # x block
                pl.BlockSpec((tk, f_pad), lambda i, k: (k, 0)),      # wb block
                pl.BlockSpec((f_pad, c_pad), lambda i, k: (0, 0)),   # wc (resident, bf16)
                pl.BlockSpec((1, c_pad), lambda i, k: (0, 0)),       # fused bias
                pl.BlockSpec((tb, 1), lambda i, k: (i, 0)),          # int32 labels (resident per i)
            ],
            out_specs=pl.BlockSpec((8, 128), lambda i, k: (i, 0)),   # per-block partial loss
            scratch_shapes=[pltpu.VMEM((tb, f_pad), jnp.float32)],   # feat accumulator
        ),
        compiler_params=pltpu.CompilerParams(
            dimension_semantics=("parallel", "arbitrary"),
            vmem_limit_bytes=vmem_limit,
        ),
        cost_estimate=cost,
    )(x2d, wb_p, wc_p, fused_bias, labels_p)

    return jnp.sum(partials) / jnp.float32(B)


def make_params(key, in_dim, feature_dim, num_classes):
    """Deterministic parameter init (synthetic, not a checkpoint load)."""
    k1, k2, k3, k4 = jax.random.split(key, 4)
    wb = jax.random.normal(k1, (in_dim, feature_dim), jnp.float32) * 0.02
    bb = jax.random.normal(k2, (1, feature_dim), jnp.float32) * 0.01
    wc = jax.random.normal(k3, (feature_dim, num_classes), jnp.float32) * 0.05
    bc = jax.random.normal(k4, (1, num_classes), jnp.float32) * 0.01
    return wb, bb, wc, bc


def _reference_loss(images_nchw, labels, params, compute_dtype):
    """Pure-JAX reference with the kernel's precision contract (bf16 operands,
    f32 accumulation, backbone bias folded through the classifier)."""
    wb, bb, wc, bc = params
    x = images_nchw.reshape(images_nchw.shape[0], -1).astype(compute_dtype)
    feat = jnp.dot(x, wb.astype(compute_dtype), preferred_element_type=jnp.float32)
    fused_bias = bb.astype(jnp.float32) @ wc.astype(jnp.float32) + bc.astype(jnp.float32)
    logits = jnp.dot(feat.astype(compute_dtype), wc.astype(compute_dtype),
                     preferred_element_type=jnp.float32) + fused_bias
    logp = jax.nn.log_softmax(logits, axis=-1)
    nll = -jnp.take_along_axis(logp, labels[:, None], axis=-1)[:, 0]
    return jnp.mean(nll)


if __name__ == "__main__":
    # SourceOnly config stand-ins: num_classes = n_share + n_source_private
    B, C, H, W = 2, 4, 16, 16          # small NCHW batch (Din = 1024)
    n_share, n_source_private = 6, 4
    num_classes = n_share + n_source_private
    feature_dim = 32

    key = jax.random.PRNGKey(0)
    k_img, k_lab, k_par = jax.random.split(key, 3)

    source_images = jax.random.normal(k_img, (B, C, H, W), jnp.float32)
    source_labels = jax.random.randint(k_lab, (B,), 0, num_classes, jnp.int32)
    params = make_params(k_par, C * H * W, feature_dim, num_classes)

    # block_k=512 so the toy run exercises the 2-step K-tiled accumulator path
    loss = source_only_forward(source_images, source_labels, params,
                               block_b=256, block_k=512)
    loss = jax.block_until_ready(loss)

    ref = _reference_loss(source_images, source_labels, params, jnp.bfloat16)
    assert jnp.allclose(loss, ref, rtol=2e-3, atol=2e-3), (loss, ref)

    print("KERNEL_OK")
</pallas_src>

<mosaic_0001>
module attributes {stable_mosaic.version = 11 : i64} {
  func.func @_source_only_fwd_kernel(%arg0: i32, %arg1: i32, %arg2: memref<16x512xbf16, #tpu.memory_space<vmem>>, %arg3: memref<512x128xbf16, #tpu.memory_space<vmem>>, %arg4: memref<128x128xbf16, #tpu.memory_space<vmem>>, %arg5: memref<1x128xf32, #tpu.memory_space<vmem>>, %arg6: memref<16x1xi32, #tpu.memory_space<vmem>>, %arg7: memref<8x128xf32, #tpu.memory_space<vmem>>, %arg8: memref<16x128xf32, #tpu.memory_space<vmem>>) attributes {dimension_semantics = [#tpu.dimension_semantics<parallel>, #tpu.dimension_semantics<arbitrary>], iteration_bounds = array<i64: 1, 2>, scalar_prefetch = 0 : i64, scratch_operands = 1 : i64, tpu.core_type = #tpu.core_type<tc>, window_params = [{transform_indices = @transform_0, window_bounds = array<i64: 16, 512>}, {transform_indices = @transform_1, window_bounds = array<i64: 512, 128>}, {pipeline_mode = #tpu.pipeline_mode<synchronous>, transform_indices = @transform_2, window_bounds = array<i64: 128, 128>}, {pipeline_mode = #tpu.pipeline_mode<synchronous>, transform_indices = @transform_3, window_bounds = array<i64: 1, 128>}, {transform_indices = @transform_4, window_bounds = array<i64: 16, 1>}, {transform_indices = @transform_5, window_bounds = array<i64: 8, 128>}]} {
    %c0_i32 = arith.constant 0 : i32
    %0 = arith.cmpi eq, %arg1, %c0_i32 : i32
    %1 = arith.extui %0 : i1 to i32
    %c0_i32_0 = arith.constant 0 : i32
    %2 = arith.cmpi ne, %1, %c0_i32_0 : i32
    scf.if %2 {
      %cst_9 = arith.constant 0.000000e+00 : f32
      %12 = vector.broadcast %cst_9 : f32 to vector<16x128xf32>
      %c0_10 = arith.constant 0 : index
      %c0_11 = arith.constant 0 : index
      %13 = vector.load %arg8[%c0_10, %c0_11] : memref<16x128xf32, #tpu.memory_space<vmem>>, vector<16x128xf32>
      tpu.vector_store %arg8[%c0_10, %c0_11], %12 {strides = array<i32>} : memref<16x128xf32, #tpu.memory_space<vmem>>, vector<16x128xf32>,
    } else {
    }
    %c0 = arith.constant 0 : index
    %c0_1 = arith.constant 0 : index
    %3 = vector.load %arg8[%c0, %c0_1] : memref<16x128xf32, #tpu.memory_space<vmem>>, vector<16x128xf32>
    %c0_2 = arith.constant 0 : index
    %c0_3 = arith.constant 0 : index
    %4 = vector.load %arg2[%c0_2, %c0_3] : memref<16x512xbf16, #tpu.memory_space<vmem>>, vector<16x512xbf16>
    %c0_4 = arith.constant 0 : index
    %c0_5 = arith.constant 0 : index
    %5 = vector.load %arg3[%c0_4, %c0_5] : memref<512x128xbf16, #tpu.memory_space<vmem>>, vector<512x128xbf16>
    %cst = arith.constant dense<0.000000e+00> : vector<16x128xf32>
    %6 = tpu.matmul %4, %5, %cst {dimension_numbers = #tpu.dot_dimension_numbers<[1], [0], [0], [1], [0, 0, 1, 1], [], []>} : vector<16x512xbf16>, vector<512x128xbf16>, vector<16x128xf32> -> vector<16x128xf32>
    %7 = arith.addf %3, %6 : vector<16x128xf32>
    %c0_6 = arith.constant 0 : index
    %c0_7 = arith.constant 0 : index
    %8 = vector.load %arg8[%c0_6, %c0_7] : memref<16x128xf32, #tpu.memory_space<vmem>>, vector<16x128xf32>
    tpu.vector_store %arg8[%c0_6, %c0_7], %7 {strides = array<i32>} : memref<16x128xf32, #tpu.memory_space<vmem>>, vector<16x128xf32>,
    %c1_i32 = arith.constant 1 : i32
    %9 = arith.cmpi eq, %arg1, %c1_i32 : i32
    %10 = arith.extui %9 : i1 to i32
    %c0_i32_8 = arith.constant 0 : i32
    %11 = arith.cmpi ne, %10, %c0_i32_8 : i32
    scf.if %11 {
      %c0_9 = arith.constant 0 : index
      %c0_10 = arith.constant 0 : index
      %12 = vector.load %arg8[%c0_9, %c0_10] : memref<16x128xf32, #tpu.memory_space<vmem>>, vector<16x128xf32>
      %13 = arith.truncf %12 : vector<16x128xf32> to vector<16x128xbf16>
      %c0_11 = arith.constant 0 : index
      %c0_12 = arith.constant 0 : index
      %14 = vector.load %arg4[%c0_11, %c0_12] : memref<128x128xbf16, #tpu.memory_space<vmem>>, vector<128x128xbf16>
      %cst_13 = arith.constant dense<0.000000e+00> : vector<16x128xf32>
      %15 = tpu.matmul %13, %14, %cst_13 {dimension_numbers = #tpu.dot_dimension_numbers<[1], [0], [0], [1], [0, 0, 1, 1], [], []>} : vector<16x128xbf16>, vector<128x128xbf16>, vector<16x128xf32> -> vector<16x128xf32>
      %c0_14 = arith.constant 0 : index
      %c0_15 = arith.constant 0 : index
      %16 = vector.load %arg5[%c0_14, %c0_15] : memref<1x128xf32, #tpu.memory_space<vmem>>, vector<1x128xf32>
      %17 = vector.broadcast %16 : vector<1x128xf32> to vector<16x128xf32>
      %18 = arith.addf %15, %17 : vector<16x128xf32>
      %cst_16 = arith.constant dense<0xFF800000> : vector<16xf32>
      %19 = vector.multi_reduction <maximumf>, %18, %cst_16 [1] : vector<16x128xf32> to vector<16xf32>
      %20 = vector.shape_cast %19 : vector<16xf32> to vector<16x1xf32>
      %21 = vector.broadcast %20 : vector<16x1xf32> to vector<16x128xf32>
      %22 = arith.subf %18, %21 : vector<16x128xf32>
      %23 = math.exp %22 : vector<16x128xf32>
      %cst_17 = arith.constant dense<0.000000e+00> : vector<16xf32>
      %24 = vector.multi_reduction <add>, %23, %cst_17 [1] : vector<16x128xf32> to vector<16xf32>
      %25 = vector.shape_cast %24 : vector<16xf32> to vector<16x1xf32>
      %26 = math.log %25 : vector<16x1xf32>
      %27 = arith.addf %20, %26 : vector<16x1xf32>
      %28 = tpu.iota {dimensions = array<i32: 1>} : vector<16x128xi32>
      %c0_18 = arith.constant 0 : index
      %c0_19 = arith.constant 0 : index
      %29 = vector.load %arg6[%c0_18, %c0_19] : memref<16x1xi32, #tpu.memory_space<vmem>>, vector<16x1xi32>
      %30 = vector.broadcast %29 : vector<16x1xi32> to vector<16x128xi32>
      %31 = arith.cmpi eq, %28, %30 : vector<16x128xi32>
      %cst_20 = arith.constant 0.000000e+00 : f32
      %32 = vector.broadcast %cst_20 : f32 to vector<16x128xf32>
      %33 = arith.select %31, %18, %32 : vector<16x128xi1>, vector<16x128xf32>
      %cst_21 = arith.constant dense<0.000000e+00> : vector<16xf32>
      %34 = vector.multi_reduction <add>, %33, %cst_21 [1] : vector<16x128xf32> to vector<16xf32>
      %35 = vector.shape_cast %34 : vector<16xf32> to vector<16x1xf32>
      %36 = arith.subf %27, %35 : vector<16x1xf32>
      %c16_i32 = arith.constant 16 : i32
      %37 = arith.muli %arg0, %c16_i32 : i32
      %38 = tpu.iota {dimensions = array<i32: 0>} : vector<16x1xi32>
      %39 = vector.broadcast %37 : i32 to vector<16x1xi32>
      %40 = arith.addi %39, %38 : vector<16x1xi32>
      %c2_i32 = arith.constant 2 : i32
      %41 = vector.broadcast %c2_i32 : i32 to vector<16x1xi32>
      %42 = arith.cmpi slt, %40, %41 : vector<16x1xi32>
      %cst_22 = arith.constant 0.000000e+00 : f32
      %43 = vector.broadcast %cst_22 : f32 to vector<16x1xf32>
      %44 = arith.select %42, %36, %43 : vector<16x1xi1>, vector<16x1xf32>
      %45 = vector.shape_cast %44 : vector<16x1xf32> to vector<1x16x1xf32>
      %cst_23 = arith.constant dense<0.000000e+00> : vector<1xf32>
      %46 = vector.multi_reduction <add>, %45, %cst_23 [1, 2] : vector<1x16x1xf32> to vector<1xf32>
      %47 = vector.shape_cast %46 : vector<1xf32> to vector<1x1x1xf32>
      %48 = vector.extract %47[0, 0, 0] : f32 from vector<1x1x1xf32>
      %49 = tpu.iota {dimensions = array<i32: 0>} : vector<8x128xi32>
      %50 = tpu.iota {dimensions = array<i32: 1>} : vector<8x128xi32>
      %c0_i32_24 = arith.constant 0 : i32
      %51 = vector.broadcast %c0_i32_24 : i32 to vector<8x128xi32>
      %52 = arith.cmpi eq, %49, %51 : vector<8x128xi32>
      %c0_i32_25 = arith.constant 0 : i32
      %53 = vector.broadcast %c0_i32_25 : i32 to vector<8x128xi32>
      %54 = arith.cmpi eq, %50, %53 : vector<8x128xi32>
      %55 = arith.andi %52, %54 : vector<8x128xi1>
      %cst_26 = arith.constant 0.000000e+00 : f32
      %56 = vector.broadcast %48 : f32 to vector<8x128xf32>
      %57 = vector.broadcast %cst_26 : f32 to vector<8x128xf32>
      %58 = arith.select %55, %56, %57 : vector<8x128xi1>, vector<8x128xf32>
      %c0_27 = arith.constant 0 : index
      %c0_28 = arith.constant 0 : index
      %59 = vector.load %arg7[%c0_27, %c0_28] : memref<8x128xf32, #tpu.memory_space<vmem>>, vector<8x128xf32>
      tpu.vector_store %arg7[%c0_27, %c0_28], %58 {strides = array<i32>} : memref<8x128xf32, #tpu.memory_space<vmem>>, vector<8x128xf32>,
    } else {
    }
    return
  }
  func.func @transform_0(%arg0: i32, %arg1: i32) -> (i32, i32) {
    %c0_i32 = arith.constant 0 : i32
    return %arg0, %arg1 : i32, i32
  }
  func.func @transform_1(%arg0: i32, %arg1: i32) -> (i32, i32) {
    %c0_i32 = arith.constant 0 : i32
    %c0_i32_0 = arith.constant 0 : i32
    return %arg1, %c0_i32 : i32, i32
  }
  func.func @transform_2(%arg0: i32, %arg1: i32) -> (i32, i32) {
    %c0_i32 = arith.constant 0 : i32
    %c0_i32_0 = arith.constant 0 : i32
    %c0_i32_1 = arith.constant 0 : i32
    return %c0_i32, %c0_i32_0 : i32, i32
  }
  func.func @transform_3(%arg0: i32, %arg1: i32) -> (i32, i32) {
    %c0_i32 = arith.constant 0 : i32
    %c0_i32_0 = arith.constant 0 : i32
    %c0_i32_1 = arith.constant 0 : i32
    return %c0_i32, %c0_i32_0 : i32, i32
  }
  func.func @transform_4(%arg0: i32, %arg1: i32) -> (i32, i32) {
    %c0_i32 = arith.constant 0 : i32
    %c0_i32_0 = arith.constant 0 : i32
    return %arg0, %c0_i32 : i32, i32
  }
  func.func @transform_5(%arg0: i32, %arg1: i32) -> (i32, i32) {
    %c0_i32 = arith.constant 0 : i32
    %c0_i32_0 = arith.constant 0 : i32
    return %arg0, %c0_i32 : i32, i32
  }
}

</mosaic_0001>

<llo_original>
// kernel: tpu_custom_call.1
$region0: #{tpu_custom_call.1}
  #allocation0 [shape = 'u32[]', space=smem, size = 0x4, offset = 0x4, fixed_abs, tag = 'smem constant byte address 0x4 - core index']
  #allocation1 [shape = 'u32[72,128]{1,0:T(1,128)}', space=vmem, size = 0x9000, scoped, tag = 'internal scratch']
  #allocation2 [shape = 'f32[16,128]{1,0:T(8,128)}', space=vmem, size = 0x2000, scoped, tag = 'scratch operand']
  %s0 = inlined_call_operand.hbm [shape: bf16[16,1024], index: 0, kind: input, shape index: {}]
  %s1 = inlined_call_operand.hbm [shape: bf16[1024,128], index: 1, kind: input, shape index: {}]
  %s2 = inlined_call_operand.hbm [shape: bf16[128,128], index: 2, kind: input, shape index: {}]
  %s3 = inlined_call_operand.vmem [shape: f32[1,128], index: 3, kind: input, shape index: {}]
  %s4 = inlined_call_operand.vmem [shape: s32[16,1], index: 4, kind: input, shape index: {}]
  %s5 = inlined_call_operand.hbm [shape: f32[8,128], index: 5, kind: output, shape index: {}]
  %s6 = sld [smem:[#allocation0]]
  $region73: #{tpu_custom_call.1} parent=0
    _
  %s8 = ssub.s32 1, %s6
  %s9 = scalar_select 0, %s8, %s6
  $region1: #{tpu_custom_call.1} parent=0
    #allocation3 [shape = 'u8[32768]{0}', space=vmem, size = 0x8000, scoped, tag = 'input window, operand 0']
    #allocation4 [shape = 's32[2]{0}', space=sflag, size = 0x8, scoped, tag = 'scoped memory for tpu_custom_call.1']
    #allocation5 [shape = 's32[2]{0}', space=sflag, size = 0x8, scoped, tag = 'scoped memory for tpu_custom_call.1']
    #allocation6 [shape = 'u8[262144]{0}', space=vmem, size = 0x40000, scoped, tag = 'input window, operand 1']
    #allocation7 [shape = 's32[2]{0}', space=sflag, size = 0x8, scoped, tag = 'scoped memory for tpu_custom_call.1']
    #allocation8 [shape = 'u8[32768]{0}', space=vmem, size = 0x8000, scoped, tag = 'input window, operand 2, single buffered']
    #allocation9 [shape = 'u8[4096]{0}', space=vmem, size = 0x1000, scoped, tag = 'output window, operand 0, single buffered']
    %10 = vsyncpa [#allocation4], 0
    %s11 = scalar_lea.sflag [#allocation4], 1
    %12 = vsyncpa %s11, 0
    %13 = vsyncpa [#allocation7], 0
    %s14 = scalar_lea.sflag [#allocation7], 1
    %15 = vsyncpa %s14, 0
    %16 = vsyncpa [#allocation5], 0
    loop: start=0, step=1, limit=4
    $region2: #{tpu_custom_call.1} parent=1 // loop_pre_header
      _
    $region3: #{tpu_custom_call.1} parent=1 // loop_header
      %s18 = sphi 0, %s22
      %p19 = scmp.ge.s32.totalorder %s18, 4
      %s25 = sphi 0, %s37
      %s26 = sphi 0, %s33
      %s27 = sphi 0, %s25
      %s28 = sphi 0, %s26
      %s29 = sphi 0, %s27
      %s30 = sphi 0, %s28
      %s42 = sphi 0, %s44
      %s45 = sphi 0, %s42
      %s46 = sphi 0, %s45
      %s62 = sphi 0, %s46
      %s68 = sphi 0, %s70
      %s71 = sphi 0, %s68
      %s72 = sphi 0, %s71
      %s88 = sphi 0, %s72
      %s92 = sphi 0, %s92
      %s94 = sphi 0, %s92
      %s95 = sphi 0, %s94
      %s109 = sphi 0, %s95
      %s113 = sphi 0, %s113
      %s115 = sphi 0, %s113
      %s116 = sphi 0, %s115
      %s130 = sphi 0, %s116
      %s136 = sphi 0, %s138
      %s139 = sphi 0, %s136
      %s140 = sphi 0, %s139
      %s156 = sphi 0, %s140
      %s162 = sphi 0, %s164
      %s165 = sphi 0, %s162
      %s166 = sphi 0, %s165
      %s182 = sphi 0, %s166
    $region4: #{tpu_custom_call.1} parent=1 // loop_header_branch
      %21 = sbr.rel (%p19) target = $region8
    $region5: #{tpu_custom_call.1} parent=1 // loop_body
      %s23 = ssub.s32 %s18, 1
      %s24 = ssub.s32 %s18, 2
      %s31 = sadd.s32 1, %s26
      %p32 = scmp.ge.s32.totalorder %s31, 2
      %s33 = scalar_select %p32, 0, %s31
      %s34 = sadd.s32 1, %s25
      %s35 = scalar_select %p32, %s34, %s25
      %p36 = scmp.ge.s32.totalorder %s35, 1
      %s37 = scalar_select %p36, 0, %s35
      %s38 = ssub.s32 %s25, %s37
      %s39 = ssub.s32 %s26, %s33
      %s40 = sor.u32 %s38, %s39
      %p41 = scmp.eq.s32.totalorder %s40, 0
      %s43 = sadd.s32 %s42, 1
      %s44 = scalar_select %p41, %s42, %s43
      %p47 = pneg %p41
      %p48 = scmp.eq.s32.totalorder %s18, 1
      %p49 = por %p47, %p48
      %p50 = scmp.ne.s32.totalorder %s42, %s45
      %p51 = scmp.eq.s32.totalorder %s18, 0
      %p52 = por %p50, %p51
      %p53 = scmp.ne.s32.totalorder %s42, %s45
      %p54 = scmp.eq.s32.totalorder %s23, 1
      %p55 = por %p53, %p54
      %p56 = scmp.ne.s32.totalorder %s45, %s46
      %p57 = scmp.eq.s32.totalorder %s23, 0
      %p58 = por %p56, %p57
      %p59 = scmp.ne.s32.totalorder %s45, %s46
      %p60 = scmp.eq.s32.totalorder %s24, 1
      %p61 = por %p59, %p60
      %p63 = scmp.ne.s32.totalorder %s46, %s62
      %p64 = scmp.eq.s32.totalorder %s24, 0
      %p65 = por %p63, %p64
      %s66 = ssub.s32 %s26, %s33
      %p67 = scmp.eq.s32.totalorder %s66, 0
      %s69 = sadd.s32 %s68, 1
      %s70 = scalar_select %p67, %s68, %s69
      %p73 = pneg %p67
      %p74 = scmp.eq.s32.totalorder %s18, 1
      %p75 = por %p73, %p74
      %p76 = scmp.ne.s32.totalorder %s68, %s71
      %p77 = scmp.eq.s32.totalorder %s18, 0
      %p78 = por %p76, %p77
      %p79 = scmp.ne.s32.totalorder %s68, %s71
      %p80 = scmp.eq.s32.totalorder %s23, 1
      %p81 = por %p79, %p80
      %p82 = scmp.ne.s32.totalorder %s71, %s72
      %p83 = scmp.eq.s32.totalorder %s23, 0
      %p84 = por %p82, %p83
      %p85 = scmp.ne.s32.totalorder %s71, %s72
      %p86 = scmp.eq.s32.totalorder %s24, 1
      %p87 = por %p85, %p86
      %p89 = scmp.ne.s32.totalorder %s72, %s88
      %p90 = scmp.eq.s32.totalorder %s24, 0
      %p91 = por %p89, %p90
      %s93 = sadd.s32 %s92, 1
      %p96 = scmp.eq.s32.totalorder %s18, 1
      %p97 = scmp.ne.s32.totalorder %s92, %s94
      %p98 = scmp.eq.s32.totalorder %s18, 0
      %p99 = por %p97, %p98
      %p100 = scmp.ne.s32.totalorder %s92, %s94
      %p101 = scmp.eq.s32.totalorder %s23, 1
      %p102 = por %p100, %p101
      %p103 = scmp.ne.s32.totalorder %s94, %s95
      %p104 = scmp.eq.s32.totalorder %s23, 0
      %p105 = por %p103, %p104
      %p106 = scmp.ne.s32.totalorder %s94, %s95
      %p107 = scmp.eq.s32.totalorder %s24, 1
      %p108 = por %p106, %p107
      %p110 = scmp.ne.s32.totalorder %s95, %s109
      %p111 = scmp.eq.s32.totalorder %s24, 0
      %p112 = por %p110, %p111
      %s114 = sadd.s32 %s113, 1
      %p117 = scmp.eq.s32.totalorder %s18, 1
      %p118 = scmp.ne.s32.totalorder %s113, %s115
      %p119 = scmp.eq.s32.totalorder %s18, 0
      %p120 = por %p118, %p119
      %p121 = scmp.ne.s32.totalorder %s113, %s115
      %p122 = scmp.eq.s32.totalorder %s23, 1
      %p123 = por %p121, %p122
      %p124 = scmp.ne.s32.totalorder %s115, %s116
      %p125 = scmp.eq.s32.totalorder %s23, 0
      %p126 = por %p124, %p125
      %p127 = scmp.ne.s32.totalorder %s115, %s116
      %p128 = scmp.eq.s32.totalorder %s24, 1
      %p129 = por %p127, %p128
      %p131 = scmp.ne.s32.totalorder %s116, %s130
      %p132 = scmp.eq.s32.totalorder %s24, 0
      %p133 = por %p131, %p132
      %s134 = ssub.s32 %s25, %s37
      %p135 = scmp.eq.s32.totalorder %s134, 0
      %s137 = sadd.s32 %s136, 1
      %s138 = scalar_select %p135, %s136, %s137
      %p141 = pneg %p135
      %p142 = scmp.eq.s32.totalorder %s18, 1
      %p143 = por %p141, %p142
      %p144 = scmp.ne.s32.totalorder %s136, %s139
      %p145 = scmp.eq.s32.totalorder %s18, 0
      %p146 = por %p144, %p145
      %p147 = scmp.ne.s32.totalorder %s136, %s139
      %p148 = scmp.eq.s32.totalorder %s23, 1
      %p149 = por %p147, %p148
      %p150 = scmp.ne.s32.totalorder %s139, %s140
      %p151 = scmp.eq.s32.totalorder %s23, 0
      %p152 = por %p150, %p151
      %p153 = scmp.ne.s32.totalorder %s139, %s140
      %p154 = scmp.eq.s32.totalorder %s24, 1
      %p155 = por %p153, %p154
      %p157 = scmp.ne.s32.totalorder %s140, %s156
      %p158 = scmp.eq.s32.totalorder %s24, 0
      %p159 = por %p157, %p158
      %s160 = ssub.s32 %s25, %s37
      %p161 = scmp.eq.s32.totalorder %s160, 0
      %s163 = sadd.s32 %s162, 1
      %s164 = scalar_select %p161, %s162, %s163
      %p167 = pneg %p161
      %p168 = scmp.eq.s32.totalorder %s18, 1
      %p169 = por %p167, %p168
      %p170 = scmp.ne.s32.totalorder %s162, %s165
      %p171 = scmp.eq.s32.totalorder %s18, 0
      %p172 = por %p170, %p171
      %p173 = scmp.ne.s32.totalorder %s162, %s165
      %p174 = scmp.eq.s32.totalorder %s23, 1
      %p175 = por %p173, %p174
      %p176 = scmp.ne.s32.totalorder %s165, %s166
      %p177 = scmp.eq.s32.totalorder %s23, 0
      %p178 = por %p176, %p177
      %p179 = scmp.ne.s32.totalorder %s165, %s166
      %p180 = scmp.eq.s32.totalorder %s24, 1
      %p181 = por %p179, %p180
      %p183 = scmp.ne.s32.totalorder %s166, %s182
      %p184 = scmp.eq.s32.totalorder %s24, 0
      %p185 = por %p183, %p184
      %p186 = scmp.le.s32.totalorder 1, %s18
      %p187 = scmp.lt.s32.totalorder %s18, 3
      %p188 = pnand %p186, %p187
      %p189 = pneg %p188
      // Predicated region
      $region9: #{tpu_custom_call.1} parent=5 // pred_check
        _
      $region10: #{tpu_custom_call.1} parent=5 // pred_check_branch
        %191 = sbr.rel (%p188) target = $region12
      $region11: #{tpu_custom_call.1} parent=5 // pred_region
        %s192 = ssub.s32 %s18, 1
        // Predicated region
        $region13: #{tpu_custom_call.1} parent=11 // pred_check
          %p193 = pneg %p105
        $region14: #{tpu_custom_call.1} parent=11 // pred_check_branch
          %195 = sbr.rel (%p193) target = $region16
        $region15: #{tpu_custom_call.1} parent=11 // pred_region
          %197 = vsyncadd [#allocation7], 0
          %s198 = sshll.u32 %s2, 4
          %s199 = int_to_ptr.hbm [resolvable:$true] %s198
          %s200 = sshll.u32 [#allocation8], 4
          %s201 = int_to_ptr.vmem [resolvable:$true] %s200
          %206 = dma.hbm_to_vmem [thread:$0]  %s199, 1024, %s201, [#allocation7], 64, 64, 4
        $region16: #{tpu_custom_call.1} parent=11 // pred_fallthru
          _
        // Predicated region
        $region17: #{tpu_custom_call.1} parent=11 // pred_check
          %p207 = pneg %p126
        $region18: #{tpu_custom_call.1} parent=11 // pred_check_branch
          %209 = sbr.rel (%p207) target = $region20
        $region19: #{tpu_custom_call.1} parent=11 // pred_region
          _
        $region20: #{tpu_custom_call.1} parent=11 // pred_fallthru
          _
        // Predicated region
        $region21: #{tpu_custom_call.1} parent=11 // pred_check
          %p210 = pneg %p152
        $region22: #{tpu_custom_call.1} parent=11 // pred_check_branch
          %212 = sbr.rel (%p210) target = $region24
        $region23: #{tpu_custom_call.1} parent=11 // pred_region
          %s213 = smul.u32 2, %s27
          %p214 = scmp.lt.s32.totalorder %s213, 1
          %s215 = scalar_select %p214, %s213, 1
          %s216 = smul.addr %s215, 8
          %s217 = scalar_lea.vmem %s4, %s216
          %s218 = smul.u32 2, %s27
        $region24: #{tpu_custom_call.1} parent=11 // pred_fallthru
          _
      $region12: #{tpu_custom_call.1} parent=5 // pred_fallthru
        _
      %p219 = scmp.lt.s32.totalorder %s18, 2
      // Predicated region
      $region25: #{tpu_custom_call.1} parent=5 // pred_check
        %p220 = pneg %p219
      $region26: #{tpu_custom_call.1} parent=5 // pred_check_branch
        %222 = sbr.rel (%p220) target = $region28
      $region27: #{tpu_custom_call.1} parent=5 // pred_region
        // Predicated region
        $region29: #{tpu_custom_call.1} parent=27 // pred_check
          %p223 = pneg %p52
        $region30: #{tpu_custom_call.1} parent=27 // pred_check_branch
          %225 = sbr.rel (%p223) target = $region32
        $region31: #{tpu_custom_call.1} parent=27 // pred_region
          %s226 = sand.u32 %s42, 1
          %s227 = scalar_lea.sflag [#allocation4], %s226
          %s228 = sand.u32 %s42, 1
          %s229 = smul.addr %s228, 32
          %s230 = scalar_lea.vmem [#allocation3], %s229
          %s231 = smul.u32 2, %s25
          %s232 = smul.u32 4, %s26
          %234 = vsyncadd %s227, 0
          %s235 = smul.addr %s231, 8
          %s236 = sadd.s32 %s232, %s235
          %s237 = smul.addr %s236, 4
          %s238 = scalar_lea.hbm %s0, %s237
          %s239 = sshll.u32 %s238, 4
          %s240 = int_to_ptr.hbm [resolvable:$true] %s239
          %s241 = sshll.u32 %s230, 4
          %s242 = int_to_ptr.vmem [resolvable:$true] %s241
          %247 = dma.hbm_to_vmem [thread:$0]  %s240, 512, %s242, %s227, 512, 256, 16
        $region32: #{tpu_custom_call.1} parent=27 // pred_fallthru
          _
        // Predicated region
        $region33: #{tpu_custom_call.1} parent=27 // pred_check
          %p248 = pneg %p78
        $region34: #{tpu_custom_call.1} parent=27 // pred_check_branch
          %250 = sbr.rel (%p248) target = $region36
        $region35: #{tpu_custom_call.1} parent=27 // pred_region
          %s251 = sand.u32 %s18, 1
          %s252 = scalar_lea.sflag [#allocation7], %s251
          %s253 = sand.u32 %s68, 1
          %s254 = smul.addr %s253, 256
          %s255 = scalar_lea.vmem [#allocation6], %s254
          %s256 = smul.u32 64, %s26
          %258 = vsyncadd %s252, 0
          %s259 = smul.addr %s256, 4
          %s260 = scalar_lea.hbm %s1, %s259
          %s261 = sshll.u32 %s260, 4
          %s262 = int_to_ptr.hbm [resolvable:$true] %s261
          %s263 = sshll.u32 %s255, 4
          %s264 = int_to_ptr.vmem [resolvable:$true] %s263
          %269 = dma.hbm_to_vmem [thread:$0]  %s262, 4096, %s264, %s252, 64, 64, 4
        $region36: #{tpu_custom_call.1} parent=27 // pred_fallthru
          _
      $region28: #{tpu_custom_call.1} parent=5 // pred_fallthru
        _
      %p270 = scmp.le.s32.totalorder 1, %s18
      %p271 = scmp.lt.s32.totalorder %s18, 3
      %p272 = pnand %p270, %p271
      %p273 = pneg %p272
      // Predicated region
      $region37: #{tpu_custom_call.1} parent=5 // pred_check
        _
      $region38: #{tpu_custom_call.1} parent=5 // pred_check_branch
        %275 = sbr.rel (%p272) target = $region40
      $region39: #{tpu_custom_call.1} parent=5 // pred_region
        %s276 = ssub.s32 %s18, 1
        %s277 = sand.u32 %s45, 1
        %s278 = scalar_lea.sflag [#allocation4], %s277
        %s279 = sand.u32 %s45, 1
        %s280 = smul.addr %s279, 32
        %s281 = scalar_lea.vmem [#allocation3], %s280
        // Predicated region
        $region41: #{tpu_custom_call.1} parent=39 // pred_check
          %p282 = pneg %p58
        $region42: #{tpu_custom_call.1} parent=39 // pred_check_branch
          %284 = sbr.rel (%p282) target = $region44
        $region43: #{tpu_custom_call.1} parent=39 // pred_region
          %286 = dma.done %s278, 512
        $region44: #{tpu_custom_call.1} parent=39 // pred_fallthru
          _
        %s287 = sand.u32 %s23, 1
        %s288 = scalar_lea.sflag [#allocation7], %s287
        %s289 = sand.u32 %s71, 1
        %s290 = smul.addr %s289, 256
        %s291 = scalar_lea.vmem [#allocation6], %s290
        // Predicated region
        $region45: #{tpu_custom_call.1} parent=39 // pred_check
          %p292 = pneg %p84
        $region46: #{tpu_custom_call.1} parent=39 // pred_check_branch
          %294 = sbr.rel (%p292) target = $region48
        $region47: #{tpu_custom_call.1} parent=39 // pred_region
          %296 = dma.done %s288, 4096
        $region48: #{tpu_custom_call.1} parent=39 // pred_fallthru
          _
        // Predicated region
        $region49: #{tpu_custom_call.1} parent=39 // pred_check
          %p297 = pneg %p105
        $region50: #{tpu_custom_call.1} parent=39 // pred_check_branch
          %299 = sbr.rel (%p297) target = $region52
        $region51: #{tpu_custom_call.1} parent=39 // pred_region
          %301 = dma.done [#allocation7], 1024
        $region52: #{tpu_custom_call.1} parent=39 // pred_fallthru
          _
        %s302 = sand.u32 %s45, 1
        %s303 = scalar_lea.sflag [#allocation4], %s302
        %s304 = sand.u32 %s45, 1
        %s305 = smul.addr %s304, 32
        %s306 = scalar_lea.vmem [#allocation3], %s305
        %p307 = pneg %p58
        %p308 = pneg %p55
        %s309 = sand.u32 %s23, 1
        %s310 = scalar_lea.sflag [#allocation7], %s309
        %s311 = sand.u32 %s71, 1
        %s312 = smul.addr %s311, 256
        %s313 = scalar_lea.vmem [#allocation6], %s312
        %p314 = pneg %p84
        %p315 = pneg %p81
        %p316 = pneg %p105
        %p317 = pneg %p102
        %p318 = pneg %p126
        %p319 = pneg %p123
        %s320 = smul.u32 2, %s27
        %p321 = scmp.lt.s32.totalorder %s320, 1
        %s322 = scalar_select %p321, %s320, 1
        %s323 = smul.addr %s322, 8
        %s324 = scalar_lea.vmem %s4, %s323
        %p325 = pneg %p152
        %p326 = pneg %p149
        %p327 = pneg %p178
        %p328 = pneg %p175
        %s329 = smul.u32 2, %s27
        %s330 = smul.u32 4, %s28
        %s331 = smul.u32 64, %s28
        %s332 = smul.u32 2, %s27
        %p333 = scmp.lt.s32.totalorder %s332, 1
        %s334 = scalar_select %p333, %s332, 1
        %s335 = smul.addr %s334, 8
        %s336 = scalar_lea.vmem %s4, %s335
        %s337 = smul.u32 2, %s27
        %p338 = scmp.eq.s32.totalorder %s28, 0
        // Predicated region
        $region53: #{tpu_custom_call.1} parent=39 // pred_check
          %p339 = pneg %p338
        $region54: #{tpu_custom_call.1} parent=39 // pred_check_branch
          %341 = sbr.rel (%p339) target = $region56
        $region55: #{tpu_custom_call.1} parent=39 // pred_region
          %342 = vst [vmem:[#allocation2] sm:$0xff] 0.0
          %343 = vst [vmem:[#allocation2 + $0x8] sm:$0xff] 0.0
        $region56: #{tpu_custom_call.1} parent=39 // pred_fallthru
          _
        %v344 = vld [vmem:[#allocation2] sm:$0xff]
        %v345 = vld [vmem:[#allocation2 + $0x8] sm:$0xff]
        %v346 = vld [vmem:[%s281] sm:$0xff]
        %v347 = vld [vmem:[%s281 + $0x8] sm:$0xff]
        %v348 = vld [vmem:[%s281 + $0x10] sm:$0xff]
        %v349 = vld [vmem:[%s281 + $0x18] sm:$0xff]
        %v350 = vld [vmem:[%s291] sm:$0xf]
        %v351 = vld [vmem:[%s291 + $0x4] sm:$0xf]
        %v352 = vld [vmem:[%s291 + $0x8] sm:$0xf]
        %v353 = vld [vmem:[%s291 + $0xc] sm:$0xf]
        %v354 = vld [vmem:[%s291 + $0x10] sm:$0xf]
        %v355 = vld [vmem:[%s291 + $0x14] sm:$0xf]
        %v356 = vld [vmem:[%s291 + $0x18] sm:$0xf]
        %v357 = vld [vmem:[%s291 + $0x1c] sm:$0xf]
        %v358 = vld [vmem:[%s291 + $0x20] sm:$0xf]
        %v359 = vld [vmem:[%s291 + $0x24] sm:$0xf]
        %v360 = vld [vmem:[%s291 + $0x28] sm:$0xf]
        %v361 = vld [vmem:[%s291 + $0x2c] sm:$0xf]
        %v362 = vld [vmem:[%s291 + $0x30] sm:$0xf]
        %v363 = vld [vmem:[%s291 + $0x34] sm:$0xf]
        %v364 = vld [vmem:[%s291 + $0x38] sm:$0xf]
        %v365 = vld [vmem:[%s291 + $0x3c] sm:$0xf]
        %v366 = vld [vmem:[%s291 + $0x40] sm:$0xf]
        %v367 = vld [vmem:[%s291 + $0x44] sm:$0xf]
        %v368 = vld [vmem:[%s291 + $0x48] sm:$0xf]
        %v369 = vld [vmem:[%s291 + $0x4c] sm:$0xf]
        %v370 = vld [vmem:[%s291 + $0x50] sm:$0xf]
        %v371 = vld [vmem:[%s291 + $0x54] sm:$0xf]
        %v372 = vld [vmem:[%s291 + $0x58] sm:$0xf]
        %v373 = vld [vmem:[%s291 + $0x5c] sm:$0xf]
        %v374 = vld [vmem:[%s291 + $0x60] sm:$0xf]
        %v375 = vld [vmem:[%s291 + $0x64] sm:$0xf]
        %v376 = vld [vmem:[%s291 + $0x68] sm:$0xf]
        %v377 = vld [vmem:[%s291 + $0x6c] sm:$0xf]
        %v378 = vld [vmem:[%s291 + $0x70] sm:$0xf]
        %v379 = vld [vmem:[%s291 + $0x74] sm:$0xf]
        %v380 = vld [vmem:[%s291 + $0x78] sm:$0xf]
        %v381 = vld [vmem:[%s291 + $0x7c] sm:$0xf]
        %v382 = vld [vmem:[%s291 + $0x80] sm:$0xf]
        %v383 = vld [vmem:[%s291 + $0x84] sm:$0xf]
        %v384 = vld [vmem:[%s291 + $0x88] sm:$0xf]
        %v385 = vld [vmem:[%s291 + $0x8c] sm:$0xf]
        %v386 = vld [vmem:[%s291 + $0x90] sm:$0xf]
        %v387 = vld [vmem:[%s291 + $0x94] sm:$0xf]
        %v388 = vld [vmem:[%s291 + $0x98] sm:$0xf]
        %v389 = vld [vmem:[%s291 + $0x9c] sm:$0xf]
        %v390 = vld [vmem:[%s291 + $0xa0] sm:$0xf]
        %v391 = vld [vmem:[%s291 + $0xa4] sm:$0xf]
        %v392 = vld [vmem:[%s291 + $0xa8] sm:$0xf]
        %v393 = vld [vmem:[%s291 + $0xac] sm:$0xf]
        %v394 = vld [vmem:[%s291 + $0xb0] sm:$0xf]
        %v395 = vld [vmem:[%s291 + $0xb4] sm:$0xf]
        %v396 = vld [vmem:[%s291 + $0xb8] sm:$0xf]
        %v397 = vld [vmem:[%s291 + $0xbc] sm:$0xf]
        %v398 = vld [vmem:[%s291 + $0xc0] sm:$0xf]
        %v399 = vld [vmem:[%s291 + $0xc4] sm:$0xf]
        %v400 = vld [vmem:[%s291 + $0xc8] sm:$0xf]
        %v401 = vld [vmem:[%s291 + $0xcc] sm:$0xf]
        %v402 = vld [vmem:[%s291 + $0xd0] sm:$0xf]
        %v403 = vld [vmem:[%s291 + $0xd4] sm:$0xf]
        %v404 = vld [vmem:[%s291 + $0xd8] sm:$0xf]
        %v405 = vld [vmem:[%s291 + $0xdc] sm:$0xf]
        %v406 = vld [vmem:[%s291 + $0xe0] sm:$0xf]
        %v407 = vld [vmem:[%s291 + $0xe4] sm:$0xf]
        %v408 = vld [vmem:[%s291 + $0xe8] sm:$0xf]
        %v409 = vld [vmem:[%s291 + $0xec] sm:$0xf]
        %v410 = vld [vmem:[%s291 + $0xf0] sm:$0xf]
        %v411 = vld [vmem:[%s291 + $0xf4] sm:$0xf]
        %v412 = vld [vmem:[%s291 + $0xf8] sm:$0xf]
        %v413 = vld [vmem:[%s291 + $0xfc] sm:$0xf]
        %v418 = vunpack.c.l.b16 %v346
        %v419 = vunpack.c.h.b16 %v346
        %v420 = vunpack.c.l.b16 %v347
        %v421 = vunpack.c.h.b16 %v347
        %v422 = vunpack.c.l.b16 %v348
        %v423 = vunpack.c.h.b16 %v348
        %v424 = vunpack.c.l.b16 %v349
        %v425 = vunpack.c.h.b16 %v349
        %v426 = vpack.c.b16 %v422, %v418
        %v427 = vpack.c.b16 %v423, %v419
        %v428 = vpack.c.b16 %v424, %v420
        %v429 = vpack.c.b16 %v425, %v421
        %v498 = vunpack.c.l.b16 %v350
        %v499 = vunpack.c.l.b16 %v351
        %v500 = vunpack.c.l.b16 %v352
        %v501 = vunpack.c.l.b16 %v353
        %v502 = vunpack.c.l.b16 %v354
        %v503 = vunpack.c.l.b16 %v355
        %v504 = vunpack.c.l.b16 %v356
        %v505 = vunpack.c.l.b16 %v357
        %v506 = vunpack.c.l.b16 %v358
        %v507 = vunpack.c.l.b16 %v359
        %v508 = vunpack.c.l.b16 %v360
        %v509 = vunpack.c.l.b16 %v361
        %v510 = vunpack.c.l.b16 %v362
        %v511 = vunpack.c.l.b16 %v363
        %v512 = vunpack.c.l.b16 %v364
        %v513 = vunpack.c.l.b16 %v365
        %v514 = vunpack.c.l.b16 %v366
        %v515 = vunpack.c.l.b16 %v367
        %v516 = vunpack.c.l.b16 %v368
        %v517 = vunpack.c.l.b16 %v369
        %v518 = vunpack.c.l.b16 %v370
        %v519 = vunpack.c.l.b16 %v371
        %v520 = vunpack.c.l.b16 %v372
        %v521 = vunpack.c.l.b16 %v373
        %v522 = vunpack.c.l.b16 %v374
        %v523 = vunpack.c.l.b16 %v375
        %v524 = vunpack.c.l.b16 %v376
        %v525 = vunpack.c.l.b16 %v377
        %v526 = vunpack.c.l.b16 %v378
        %v527 = vunpack.c.l.b16 %v379
        %v528 = vunpack.c.l.b16 %v380
        %v529 = vunpack.c.l.b16 %v381
        %v530 = vunpack.c.l.b16 %v382
        %v531 = vunpack.c.l.b16 %v383
        %v532 = vunpack.c.l.b16 %v384
        %v533 = vunpack.c.l.b16 %v385
        %v534 = vunpack.c.l.b16 %v386
        %v535 = vunpack.c.l.b16 %v387
        %v536 = vunpack.c.l.b16 %v388
        %v537 = vunpack.c.l.b16 %v389
        %v538 = vunpack.c.l.b16 %v390
        %v539 = vunpack.c.l.b16 %v391
        %v540 = vunpack.c.l.b16 %v392
        %v541 = vunpack.c.l.b16 %v393
        %v542 = vunpack.c.l.b16 %v394
        %v543 = vunpack.c.l.b16 %v395
        %v544 = vunpack.c.l.b16 %v396
        %v545 = vunpack.c.l.b16 %v397
        %v546 = vunpack.c.l.b16 %v398
        %v547 = vunpack.c.l.b16 %v399
        %v548 = vunpack.c.l.b16 %v400
        %v549 = vunpack.c.l.b16 %v401
        %v550 = vunpack.c.l.b16 %v402
        %v551 = vunpack.c.l.b16 %v403
        %v552 = vunpack.c.l.b16 %v404
        %v553 = vunpack.c.l.b16 %v405
        %v554 = vunpack.c.l.b16 %v406
        %v555 = vunpack.c.l.b16 %v407
        %v556 = vunpack.c.l.b16 %v408
        %v557 = vunpack.c.l.b16 %v409
        %v558 = vunpack.c.l.b16 %v410
        %v559 = vunpack.c.l.b16 %v411
        %v560 = vunpack.c.l.b16 %v412
        %v561 = vunpack.c.l.b16 %v413
        %v562 = vpack.c.b16 %v499, %v498
        %v563 = vpack.c.b16 %v501, %v500
        %v564 = vpack.c.b16 %v503, %v502
        %v565 = vpack.c.b16 %v505, %v504
        %v566 = vpack.c.b16 %v507, %v506
        %v567 = vpack.c.b16 %v509, %v508
        %v568 = vpack.c.b16 %v511, %v510
        %v569 = vpack.c.b16 %v513, %v512
        %v570 = vpack.c.b16 %v515, %v514
        %v571 = vpack.c.b16 %v517, %v516
        %v572 = vpack.c.b16 %v519, %v518
        %v573 = vpack.c.b16 %v521, %v520
        %v574 = vpack.c.b16 %v523, %v522
        %v575 = vpack.c.b16 %v525, %v524
        %v576 = vpack.c.b16 %v527, %v526
        %v577 = vpack.c.b16 %v529, %v528
        %v578 = vpack.c.b16 %v531, %v530
        %v579 = vpack.c.b16 %v533, %v532
        %v580 = vpack.c.b16 %v535, %v534
        %v581 = vpack.c.b16 %v537, %v536
        %v582 = vpack.c.b16 %v539, %v538
        %v583 = vpack.c.b16 %v541, %v540
        %v584 = vpack.c.b16 %v543, %v542
        %v585 = vpack.c.b16 %v545, %v544
        %v586 = vpack.c.b16 %v547, %v546
        %v587 = vpack.c.b16 %v549, %v548
        %v588 = vpack.c.b16 %v551, %v550
        %v589 = vpack.c.b16 %v553, %v552
        %v590 = vpack.c.b16 %v555, %v554
        %v591 = vpack.c.b16 %v557, %v556
        %v592 = vpack.c.b16 %v559, %v558
        %v593 = vpack.c.b16 %v561, %v560
        %626 = vmatpush.bf16.msra.mxu0 %v569
        %627 = vmatpush.bf16.msra.mxu0 %v568
        %628 = vmatpush.bf16.msra.mxu0 %v567
        %629 = vmatpush.bf16.msra.mxu0 %v566
        %630 = vmatpush.bf16.msra.mxu0 %v565
        %631 = vmatpush.bf16.msra.mxu0 %v564
        %632 = vmatpush.bf16.msra.mxu0 %v563
        %633 = vmatpush.bf16.msra.mxu0 %v562
        %634 = vmatmul.bf16.gmra.mxu0 %v426
        %v635 = vpop.f32.mrf.mxu0
        %v636 = vadd.f32 0.0, %v635
        %v637 = vpop.f32.mrf.mxu0
        %v638 = vadd.f32 0.0, %v637
        %639 = vdwg.mxu0
        %640 = vmatpush.bf16.msra.mxu0 %v577
        %641 = vmatpush.bf16.msra.mxu0 %v576
        %642 = vmatpush.bf16.msra.mxu0 %v575
        %643 = vmatpush.bf16.msra.mxu0 %v574
        %644 = vmatpush.bf16.msra.mxu0 %v573
        %645 = vmatpush.bf16.msra.mxu0 %v572
        %646 = vmatpush.bf16.msra.mxu0 %v571
        %647 = vmatpush.bf16.msra.mxu0 %v570
        %648 = vmatmul.bf16.gmra.mxu0 %v427
        %v649 = vpop.f32.mrf.mxu0
        %v650 = vadd.f32 %v636, %v649
        %v651 = vpop.f32.mrf.mxu0
        %v652 = vadd.f32 %v638, %v651
        %653 = vdwg.mxu0
        %654 = vmatpush.bf16.msra.mxu0 %v585
        %655 = vmatpush.bf16.msra.mxu0 %v584
        %656 = vmatpush.bf16.msra.mxu0 %v583
        %657 = vmatpush.bf16.msra.mxu0 %v582
        %658 = vmatpush.bf16.msra.mxu0 %v581
        %659 = vmatpush.bf16.msra.mxu0 %v580
        %660 = vmatpush.bf16.msra.mxu0 %v579
        %661 = vmatpush.bf16.msra.mxu0 %v578
        %662 = vmatmul.bf16.gmra.mxu0 %v428
        %v663 = vpop.f32.mrf.mxu0
        %v664 = vadd.f32 %v650, %v663
        %v665 = vpop.f32.mrf.mxu0
        %v666 = vadd.f32 %v652, %v665
        %667 = vdwg.mxu0
        %668 = vmatpush.bf16.msra.mxu0 %v593
        %669 = vmatpush.bf16.msra.mxu0 %v592
        %670 = vmatpush.bf16.msra.mxu0 %v591
        %671 = vmatpush.bf16.msra.mxu0 %v590
        %672 = vmatpush.bf16.msra.mxu0 %v589
        %673 = vmatpush.bf16.msra.mxu0 %v588
        %674 = vmatpush.bf16.msra.mxu0 %v587
        %675 = vmatpush.bf16.msra.mxu0 %v586
        %676 = vmatmul.bf16.gmra.mxu0 %v429
        %v677 = vpop.f32.mrf.mxu0
        %v678 = vadd.f32 %v664, %v677
        %v679 = vpop.f32.mrf.mxu0
        %v680 = vadd.f32 %v666, %v679
        %681 = vdwg.mxu0
        %v682 = vadd.f32 %v344, %v678
        %v683 = vadd.f32 %v345, %v680
        %684 = vst [vmem:[#allocation2] sm:$0xff] %v682
        %685 = vst [vmem:[#allocation2 + $0x8] sm:$0xff] %v683
        %p686 = scmp.eq.s32.totalorder %s28, 1
        // Predicated region
        $region57: #{tpu_custom_call.1} parent=39 // pred_check
          %p687 = pneg %p686
        $region58: #{tpu_custom_call.1} parent=39 // pred_check_branch
          %689 = sbr.rel (%p687) target = $region60
        $region59: #{tpu_custom_call.1} parent=39 // pred_region
          %v690 = vld [vmem:[#allocation2] sm:$0xff]
          %v691 = vld [vmem:[#allocation2 + $0x8] sm:$0xff]
          %v692 = vpack.c.bf16 %v691, %v690
          %v693 = vld [vmem:[#allocation8] sm:$0xf]
          %v694 = vld [vmem:[#allocation8 + $0x4] sm:$0xf]
          %v695 = vld [vmem:[#allocation8 + $0x8] sm:$0xf]
          %v696 = vld [vmem:[#allocation8 + $0xc] sm:$0xf]
          %v697 = vld [vmem:[#allocation8 + $0x10] sm:$0xf]
          %v698 = vld [vmem:[#allocation8 + $0x14] sm:$0xf]
          %v699 = vld [vmem:[#allocation8 + $0x18] sm:$0xf]
          %v700 = vld [vmem:[#allocation8 + $0x1c] sm:$0xf]
          %v701 = vld [vmem:[#allocation8 + $0x20] sm:$0xf]
          %v702 = vld [vmem:[#allocation8 + $0x24] sm:$0xf]
          %v703 = vld [vmem:[#allocation8 + $0x28] sm:$0xf]
          %v704 = vld [vmem:[#allocation8 + $0x2c] sm:$0xf]
          %v705 = vld [vmem:[#allocation8 + $0x30] sm:$0xf]
          %v706 = vld [vmem:[#allocation8 + $0x34] sm:$0xf]
          %v707 = vld [vmem:[#allocation8 + $0x38] sm:$0xf]
          %v708 = vld [vmem:[#allocation8 + $0x3c] sm:$0xf]
          %v709 = vld [vmem:[%s3] sm:$0x1]
          %v711 = vperm.slane %v709, 0
          %v729 = vunpack.c.l.b16 %v693
          %v730 = vunpack.c.l.b16 %v694
          %v731 = vunpack.c.l.b16 %v695
          %v732 = vunpack.c.l.b16 %v696
          %v733 = vunpack.c.l.b16 %v697
          %v734 = vunpack.c.l.b16 %v698
          %v735 = vunpack.c.l.b16 %v699
          %v736 = vunpack.c.l.b16 %v700
          %v737 = vunpack.c.l.b16 %v701
          %v738 = vunpack.c.l.b16 %v702
          %v739 = vunpack.c.l.b16 %v703
          %v740 = vunpack.c.l.b16 %v704
          %v741 = vunpack.c.l.b16 %v705
          %v742 = vunpack.c.l.b16 %v706
          %v743 = vunpack.c.l.b16 %v707
          %v744 = vunpack.c.l.b16 %v708
          %v745 = vpack.c.b16 %v730, %v729
          %v746 = vpack.c.b16 %v732, %v731
          %v747 = vpack.c.b16 %v734, %v733
          %v748 = vpack.c.b16 %v736, %v735
          %v749 = vpack.c.b16 %v738, %v737
          %v750 = vpack.c.b16 %v740, %v739
          %v751 = vpack.c.b16 %v742, %v741
          %v752 = vpack.c.b16 %v744, %v743
          %761 = vmatpush.bf16.msra.mxu0 %v752
          %762 = vmatpush.bf16.msra.mxu0 %v751
          %763 = vmatpush.bf16.msra.mxu0 %v750
          %764 = vmatpush.bf16.msra.mxu0 %v749
          %765 = vmatpush.bf16.msra.mxu0 %v748
          %766 = vmatpush.bf16.msra.mxu0 %v747
          %767 = vmatpush.bf16.msra.mxu0 %v746
          %768 = vmatpush.bf16.msra.mxu0 %v745
          %769 = vmatmul.bf16.gmra.mxu0 %v692
          %v770 = vpop.f32.mrf.mxu0
          %v771 = vadd.f32 %v711, %v770
          %v772 = vpop.f32.mrf.mxu0
          %v773 = vadd.f32 %v711, %v772
          %774 = vdwg.mxu0
          %775 = vmax.xlane.f32.xlu0 %v771
          %v776 = vpop.xlane.xlu0 %775
          %777 = vmax.xlane.f32.xlu0 %v773
          %v778 = vpop.xlane.xlu0 %777
          %v779 = vsub.f32 %v771, %v776
          %v780 = vsub.f32 %v773, %v778
          %v781 = vmul.f32 %v779, 1.442695
          %v782 = vpow.pop %v781
          %v783 = vmul.f32 %v780, 1.442695
          %v784 = vpow.pop %v783
          %785 = vadd.xlane.f32.xlu0 %v782
          %v786 = vpop.xlane.xlu0 %785
          %787 = vadd.xlane.f32.xlu0 %v784
          %v788 = vpop.xlane.xlu0 %787
          %v789 = vlog2.pop %v786
          %v790 = vmul.f32 %v789, 0.6931472
          %v791 = vlog2.pop %v788
          %v792 = vmul.f32 %v791, 0.6931472
          %v793 = vadd.f32 %v776, %v790
          %v794 = vadd.f32 %v778, %v792
          %v795 = vlaneseq
          %v796 = vand.u32 %v795, 127
          %v797 = vld [vmem:[%s336] sm:$0xff]
          %v798 = vld [vmem:[%s336 + $0x8] sm:$0xff]
          %799 = vset.pattern.permute.xlu0 0
          %800 = vperm.xlu0 %799, %v797
          %v801 = vpop.permute.xlu0 %800
          %802 = vset.pattern.permute.xlu0 0
          %803 = vperm.xlu0 %802, %v798
          %v804 = vpop.permute.xlu0 %803
          %vm805 = vcmp.eq.s32.totalorder %v796, %v801
          %vm806 = vcmp.eq.s32.totalorder %v796, %v804
          %v807 = vsel %vm805, %v771, 0.0
          %v808 = vsel %vm806, %v773, 0.0
          %809 = vadd.xlane.f32.xlu0 %v807
          %v810 = vpop.xlane.xlu0 %809
          %811 = vadd.xlane.f32.xlu0 %v808
          %v812 = vpop.xlane.xlu0 %811
          %v813 = vsub.f32 %v793, %v810
          %v814 = vsub.f32 %v794, %v812
          %s815 = smul.u32 %s27, 16
          %v816 = vlaneseq
          %v817 = vshrl.u32 %v816, 7
          %v818 = vadd.s32 %v817, 8
          %v819 = vstv %s815
          %v820 = vadd.s32 %v819, %v817
          %v821 = vadd.s32 %v819, %v818
          %vm822 = vcmp.lt.s32.totalorder %v820, 2
          %vm823 = vcmp.lt.s32.totalorder %v821, 2
          %v824 = vsel %vm822, %v813, 0.0
          %v825 = vsel %vm823, %v814, 0.0
          %vm826 = vcmask 7168
          %v827 = vsel %vm826, %v824, 0.0
          %v828 = vsel %vm826, %v825, 0.0
          %v829 = vadd.f32 %v827, %v828
          %830 = vadd.xlane.f32.xlu0 %v829
          %v831 = vpop.xlane.xlu0 %830
          %v832 = vrot.slane %v831, 4
          %v833 = vadd.f32 %v831, %v832
          %v834 = vrot.slane %v833, 2
          %v835 = vadd.f32 %v833, %v834
          %v836 = vrot.slane %v835, 1
          %v837 = vadd.f32 %v835, %v836
          %s838 = vtos %v837
          %vm839 = vcmp.eq.s32.totalorder %v817, 0
          %vm840 = vcmp.eq.s32.totalorder %v796, 0
          %vm841 = vmand %vm839, %vm840
          %v842 = vstv %s838
          %v843 = vsel %vm841, %v842, 0.0
          %844 = vst [vmem:[#allocation9] sm:$0xff] %v843
        $region60: #{tpu_custom_call.1} parent=39 // pred_fallthru
          _
        // Predicated region
        $region61: #{tpu_custom_call.1} parent=39 // pred_check
          %p845 = pneg %p175
        $region62: #{tpu_custom_call.1} parent=39 // pred_check_branch
          %847 = sbr.rel (%p845) target = $region64
        $region63: #{tpu_custom_call.1} parent=39 // pred_region
          %849 = vsyncadd [#allocation5], 0
          %s850 = smul.addr %s27, 8
          %s851 = scalar_lea.hbm %s5, %s850
          %s853 = sshll.u32 [#allocation9], 4
          %s854 = int_to_ptr.vmem [resolvable:$true] %s853
          %s855 = sshll.u32 %s851, 4
          %s856 = int_to_ptr.hbm [resolvable:$true] %s855
          %858 = dma.vmem_to_hbm [thread:$0]  %s854, 128, %s856, [#allocation5]
        $region64: #{tpu_custom_call.1} parent=39 // pred_fallthru
          _
        // Predicated region
        $region65: #{tpu_custom_call.1} parent=39 // pred_check
          %p859 = pneg %p175
        $region66: #{tpu_custom_call.1} parent=39 // pred_check_branch
          %861 = sbr.rel (%p859) target = $region68
        $region67: #{tpu_custom_call.1} parent=39 // pred_region
          %863 = dma.done [#allocation5], 128
        $region68: #{tpu_custom_call.1} parent=39 // pred_fallthru
          _
      $region40: #{tpu_custom_call.1} parent=5 // pred_fallthru
        _
      %p864 = scmp.le.s32.totalorder 2, %s18
      // Predicated region
      $region69: #{tpu_custom_call.1} parent=5 // pred_check
        %p865 = pneg %p864
      $region70: #{tpu_custom_call.1} parent=5 // pred_check_branch
        %867 = sbr.rel (%p865) target = $region72
      $region71: #{tpu_custom_call.1} parent=5 // pred_region
        %s868 = ssub.s32 %s18, 2
      $region72: #{tpu_custom_call.1} parent=5 // pred_fallthru
        _
    $region6: #{tpu_custom_call.1} parent=1 // loop_footer
      %s22 = sadd.s32 1, %s18
    $region7: #{tpu_custom_call.1} parent=1 // loop_footer_branch
      %17 = sbr.rel target = $region3
    $region8: #{tpu_custom_call.1} parent=1 // loop_exit
      _
    %869 = vsyncpa [#allocation4], 1
    %s870 = scalar_lea.sflag [#allocation4], 1
    %871 = vsyncpa %s870, 1
    %872 = vsyncpa [#allocation7], 1
    %s873 = scalar_lea.sflag [#allocation7], 1
    %874 = vsyncpa %s873, 1
    %875 = vsyncpa [#allocation5], 1
    %s876 = scalar_lea.sflag [#allocation5], 1
    %877 = vsyncpa %s876, 1

</llo_original>
